<compile_context>
chip_gen: v7x
topology: tpu7x:2x2x1
jax: 0.10.0
libtpu: 0.0.40
codegen_flags: <defaults>
</compile_context>

<pallas_src>
import functools

import jax
import jax.numpy as jnp
from jax import lax
from jax.experimental import pallas as pl
from jax.experimental.pallas import tpu as pltpu


def _focal_loss_kernel(x_ref, t_ref, out_ref, *, gamma, ignore_index, n_rows,
                       row_tile, tile_reduce):
    """Per-tile: log-softmax stats + target gather + focal loss (per row or
    reduced to one lane-dense partial sum)."""
    i = pl.program_id(0)

    x = x_ref[...].astype(jnp.float32)      # [TN, C]
    t = t_ref[...]                          # [TN, 1] int32

    # Gather the target-class logit on the raw logits, independent of the max
    # pass, so the two cross-lane reduces don't serialize.  Ignored (or
    # out-of-range) targets match no column -> x_t = 0; those rows are masked
    # below.  NOTE: out-of-range targets that are not ignore_index are not
    # clamped (the PyTorch reference would error); documented edge case.
    col = lax.broadcasted_iota(jnp.int32, x.shape, 1)                   # [TN,C]
    x_t = jnp.sum(jnp.where(col == t, x, 0.0), axis=1, keepdims=True)   # [TN,1]

    # log-sum-exp over the class (lane) axis — the only full-tile EUP op.
    m = jnp.max(x, axis=1, keepdims=True)                               # [TN,1]
    lse = m + jnp.log(jnp.sum(jnp.exp(x - m), axis=1, keepdims=True))   # [TN,1]

    # Everything below is per-row ([TN, 1]) only.
    log_pt_t = x_t - lse
    pt_t = jnp.exp(log_pt_t)
    # (1 - pt) cancels in f32 when pt -> 1, but the loss is ~0 there anyway;
    # expm1 is avoided to stay on the guaranteed Mosaic lowering path.
    one_minus_pt = 1.0 - pt_t
    if isinstance(gamma, int):
        mod = lax.integer_pow(one_minus_pt, gamma)   # gamma=2 -> two VPU muls
    else:
        mod = one_minus_pt ** gamma
    focal_t = mod * log_pt_t

    # Validity: target != ignore_index AND the row is a real (non-tail) row.
    row = i * row_tile + lax.broadcasted_iota(jnp.int32, t.shape, 0)
    valid = (t != ignore_index) & (row < n_rows)
    losses = jnp.where(valid, -focal_t, 0.0)                            # [TN,1]

    if tile_reduce:
        # One lane-dense (1,128) partial-sum block per tile (all lanes hold the
        # same value); the wrapper reads one lane per tile and sums.
        part = jnp.sum(losses, axis=0, keepdims=True)                   # [1,1]
        out_ref[...] = jnp.broadcast_to(part, out_ref.shape)
    else:
        out_ref[...] = losses


def _round_up(v, m):
    return ((v + m - 1) // m) * m


def _choose_row_tile(n, c, itemsize, *, max_block_bytes=4 * 1024 * 1024,
                     max_rows=8192):
    """Row tile: sublane-packed multiple, <= ~4 MiB logits block, <= 8192 rows,
    and capped at ceil(n/2) when possible so the grid has >= 2 parallel steps
    (lets v7x shard across its two TensorCores)."""
    sub = 8 * max(1, 4 // max(1, itemsize))          # 8 f32 / 16 bf16 / 32 int8
    n_pad = _round_up(n, sub)
    rows = max_block_bytes // max(1, c * itemsize)
    rows = max(sub, (rows // sub) * sub)
    rows = min(rows, max_rows)
    if n_pad >= 2 * sub:
        rows = min(rows, _round_up(_round_up(n_pad, 2) // 2, sub))
    return max(sub, min(rows, n_pad))


def focal_loss(x, target, *, gamma=2, weight=None, ignore_index=-100,
               reduction="mean", row_tile=None):
    """x: [N, C] float (f32 or bf16), target: [N] int. Mirrors FocalLoss.forward."""
    if weight is not None:
        # TODO(synk): per-class `weight` (alpha) rescaling is not implemented.
        raise NotImplementedError("per-class weight is not supported")
    if reduction not in ("mean", "sum", "none"):
        raise ValueError(f"unknown reduction: {reduction}")

    n, c = x.shape
    itemsize = jnp.dtype(x.dtype).itemsize
    if row_tile is None:
        row_tile = _choose_row_tile(n, c, itemsize)
    grid = pl.cdiv(n, row_tile)
    t2d = target.astype(jnp.int32).reshape(n, 1)
    tile_reduce = reduction != "none"

    kernel = functools.partial(
        _focal_loss_kernel,
        gamma=gamma,
        ignore_index=ignore_index,
        n_rows=n,
        row_tile=row_tile,
        tile_reduce=tile_reduce,
    )

    if tile_reduce:
        # Lane-dense: one (1, 128) partial-sum block per grid step.
        out_shape = jax.ShapeDtypeStruct((1, 128 * grid), jnp.float32)
        out_spec = pl.BlockSpec((1, 128), lambda i: (0, i))
    else:
        # Per-row losses; lane-sparse, but only used for reduction='none'.
        # TODO(synk): lane-dense repack of the per-row output (and k=128//C row
        # packing for tiny C) left as a follow-up.
        out_shape = jax.ShapeDtypeStruct((n, 1), jnp.float32)
        out_spec = pl.BlockSpec((row_tile, 1), lambda i: (i, 0))

    out = pl.pallas_call(
        kernel,
        out_shape=out_shape,
        grid_spec=pltpu.PrefetchScalarGridSpec(
            num_scalar_prefetch=0,
            grid=(grid,),
            in_specs=[
                # If exposed input DMA shows up in profiles (tiny C), sweep
                # pipeline_mode=pl.Buffered(3) on this spec.
                pl.BlockSpec((row_tile, c), lambda i: (i, 0)),
                pl.BlockSpec((row_tile, 1), lambda i: (i, 0)),
            ],
            out_specs=out_spec,
        ),
        compiler_params=pltpu.CompilerParams(
            dimension_semantics=("parallel",),
            # Double-buffered <=4 MiB logit blocks + elementwise temporaries;
            # 48 MiB is safe on v5e/v6e (128 MiB VMEM) and v7x (64 MiB VMEM).
            vmem_limit_bytes=48 * 1024 * 1024,
        ),
    )(x, t2d)

    if reduction == "none":
        return out[:, 0]
    partials = out.reshape(grid, 128)[:, 0]          # one partial sum per tile
    loss_sum = jnp.sum(partials)
    if reduction == "sum":
        return loss_sum
    # 'mean': divide by the number of non-ignored rows (PyTorch semantics;
    # NaN when every row is ignored).
    valid_count = jnp.sum((target != ignore_index).astype(jnp.float32))
    return loss_sum / valid_count


def _focal_loss_ref(x, target, *, gamma=2, ignore_index=-100, reduction="mean"):
    """Plain-JAX reference mirroring the PyTorch module."""
    log_pt = jax.nn.log_softmax(x.astype(jnp.float32), axis=1)
    pt = jnp.exp(log_pt)
    focal = ((1.0 - pt) ** gamma) * log_pt
    picked = jnp.take_along_axis(
        focal, jnp.clip(target, 0, x.shape[1] - 1)[:, None], axis=1)[:, 0]
    valid = target != ignore_index
    losses = jnp.where(valid, -picked, 0.0)
    if reduction == "sum":
        return jnp.sum(losses)
    if reduction == "none":
        return losses
    return jnp.sum(losses) / jnp.sum(valid.astype(jnp.float32))


if __name__ == "__main__":
    key = jax.random.PRNGKey(0)
    k_x, k_t = jax.random.split(key)

    # Small shapes consistent with the module: [N, C] logits, [N] class ids.
    N, C = 16, 32
    x = jax.random.normal(k_x, (N, C), dtype=jnp.float32)
    target = jax.random.randint(k_t, (N,), 0, C, dtype=jnp.int32)
    # Exercise ignore_index on a couple of rows.
    target = target.at[3].set(-100).at[11].set(-100)

    # reduction='mean' (module default) — partial-sum path, grid of 2 tiles.
    loss = jax.block_until_ready(focal_loss(x, target))
    ref = _focal_loss_ref(x, target)
    assert jnp.allclose(loss, ref, atol=1e-5, rtol=1e-5), (loss, ref)

    # reduction='sum'
    loss_s = jax.block_until_ready(focal_loss(x, target, reduction="sum"))
    ref_s = _focal_loss_ref(x, target, reduction="sum")
    assert jnp.allclose(loss_s, ref_s, atol=1e-5, rtol=1e-5), (loss_s, ref_s)

    # reduction='none' — per-row output path.
    loss_n = jax.block_until_ready(focal_loss(x, target, reduction="none"))
    ref_n = _focal_loss_ref(x, target, reduction="none")
    assert jnp.allclose(loss_n, ref_n, atol=1e-5, rtol=1e-5), (loss_n, ref_n)

    # Non-divisible N (exercises the in-kernel tail mask / partial last block).
    N2 = 20
    x2 = jax.random.normal(k_x, (N2, C), dtype=jnp.float32)
    t2 = jax.random.randint(k_t, (N2,), 0, C, dtype=jnp.int32).at[0].set(-100)
    loss2 = jax.block_until_ready(focal_loss(x2, t2, row_tile=16))
    ref2 = _focal_loss_ref(x2, t2)
    assert jnp.allclose(loss2, ref2, atol=1e-5, rtol=1e-5), (loss2, ref2)

    # bf16 logits: halves the dominant HBM read; math stays f32 in-kernel.
    xb = x.astype(jnp.bfloat16)
    loss_b = jax.block_until_ready(focal_loss(xb, target))
    ref_b = _focal_loss_ref(xb, target)
    assert jnp.allclose(loss_b, ref_b, atol=1e-5, rtol=1e-5), (loss_b, ref_b)

    print("KERNEL_OK")
</pallas_src>

<mosaic_0001>
module attributes {stable_mosaic.version = 11 : i64} {
  func.func @_focal_loss_kernel(%arg0: i32, %arg1: memref<8x32xf32, #tpu.memory_space<vmem>>, %arg2: memref<8x1xi32, #tpu.memory_space<vmem>>, %arg3: memref<1x128xf32, #tpu.memory_space<vmem>>) attributes {dimension_semantics = [#tpu.dimension_semantics<parallel>], iteration_bounds = array<i64: 2>, scalar_prefetch = 0 : i64, scratch_operands = 0 : i64, tpu.core_type = #tpu.core_type<tc>, window_params = [{transform_indices = @transform_0, window_bounds = array<i64: 8, 32>}, {transform_indices = @transform_1, window_bounds = array<i64: 8, 1>}, {transform_indices = @transform_2, window_bounds = array<i64: 1, 128>}]} {
    %c0 = arith.constant 0 : index
    %c0_0 = arith.constant 0 : index
    %0 = vector.load %arg1[%c0, %c0_0] : memref<8x32xf32, #tpu.memory_space<vmem>>, vector<8x32xf32>
    %c0_1 = arith.constant 0 : index
    %c0_2 = arith.constant 0 : index
    %1 = vector.load %arg2[%c0_1, %c0_2] : memref<8x1xi32, #tpu.memory_space<vmem>>, vector<8x1xi32>
    %2 = tpu.iota {dimensions = array<i32: 1>} : vector<8x32xi32>
    %3 = vector.broadcast %1 : vector<8x1xi32> to vector<8x32xi32>
    %4 = arith.cmpi eq, %2, %3 : vector<8x32xi32>
    %cst = arith.constant 0.000000e+00 : f32
    %5 = vector.broadcast %cst : f32 to vector<8x32xf32>
    %6 = arith.select %4, %0, %5 : vector<8x32xi1>, vector<8x32xf32>
    %cst_3 = arith.constant dense<0.000000e+00> : vector<8xf32>
    %7 = vector.multi_reduction <add>, %6, %cst_3 [1] : vector<8x32xf32> to vector<8xf32>
    %8 = vector.shape_cast %7 : vector<8xf32> to vector<8x1xf32>
    %cst_4 = arith.constant dense<0xFF800000> : vector<8xf32>
    %9 = vector.multi_reduction <maximumf>, %0, %cst_4 [1] : vector<8x32xf32> to vector<8xf32>
    %10 = vector.shape_cast %9 : vector<8xf32> to vector<8x1xf32>
    %11 = vector.broadcast %10 : vector<8x1xf32> to vector<8x32xf32>
    %12 = arith.subf %0, %11 : vector<8x32xf32>
    %13 = math.exp %12 : vector<8x32xf32>
    %cst_5 = arith.constant dense<0.000000e+00> : vector<8xf32>
    %14 = vector.multi_reduction <add>, %13, %cst_5 [1] : vector<8x32xf32> to vector<8xf32>
    %15 = vector.shape_cast %14 : vector<8xf32> to vector<8x1xf32>
    %16 = math.log %15 : vector<8x1xf32>
    %17 = arith.addf %10, %16 : vector<8x1xf32>
    %18 = arith.subf %8, %17 : vector<8x1xf32>
    %19 = math.exp %18 : vector<8x1xf32>
    %cst_6 = arith.constant 1.000000e+00 : f32
    %20 = vector.broadcast %cst_6 : f32 to vector<8x1xf32>
    %21 = arith.subf %20, %19 : vector<8x1xf32>
    %22 = arith.mulf %21, %21 : vector<8x1xf32>
    %23 = arith.mulf %22, %18 : vector<8x1xf32>
    %c8_i32 = arith.constant 8 : i32
    %24 = arith.muli %arg0, %c8_i32 : i32
    %25 = tpu.iota {dimensions = array<i32: 0>} : vector<8x1xi32>
    %26 = vector.broadcast %24 : i32 to vector<8x1xi32>
    %27 = arith.addi %26, %25 : vector<8x1xi32>
    %c-100_i32 = arith.constant -100 : i32
    %28 = vector.broadcast %c-100_i32 : i32 to vector<8x1xi32>
    %29 = arith.cmpi ne, %1, %28 : vector<8x1xi32>
    %c16_i32 = arith.constant 16 : i32
    %30 = vector.broadcast %c16_i32 : i32 to vector<8x1xi32>
    %31 = arith.cmpi slt, %27, %30 : vector<8x1xi32>
    %32 = arith.andi %29, %31 : vector<8x1xi1>
    %cst_7 = arith.constant 0.000000e+00 : f32
    %33 = vector.broadcast %cst_7 : f32 to vector<8x1xf32>
    %34 = arith.subf %33, %23 : vector<8x1xf32>
    %cst_8 = arith.constant 0.000000e+00 : f32
    %35 = vector.broadcast %cst_8 : f32 to vector<8x1xf32>
    %36 = arith.select %32, %34, %35 : vector<8x1xi1>, vector<8x1xf32>
    %cst_9 = arith.constant dense<0.000000e+00> : vector<1xf32>
    %37 = vector.multi_reduction <add>, %36, %cst_9 [0] : vector<8x1xf32> to vector<1xf32>
    %38 = vector.shape_cast %37 : vector<1xf32> to vector<1x1xf32>
    %39 = vector.shape_cast %38 : vector<1x1xf32> to vector<1x1xf32>
    %40 = vector.broadcast %39 : vector<1x1xf32> to vector<1x128xf32>
    %c0_10 = arith.constant 0 : index
    %c0_11 = arith.constant 0 : index
    %41 = vector.load %arg3[%c0_10, %c0_11] : memref<1x128xf32, #tpu.memory_space<vmem>>, vector<1x128xf32>
    tpu.vector_store %arg3[%c0_10, %c0_11], %40 {strides = array<i32>} : memref<1x128xf32, #tpu.memory_space<vmem>>, vector<1x128xf32>,
    return
  }
  func.func @transform_0(%arg0: i32) -> (i32, i32) {
    %c0_i32 = arith.constant 0 : i32
    %c0_i32_0 = arith.constant 0 : i32
    return %arg0, %c0_i32 : i32, i32
  }
  func.func @transform_1(%arg0: i32) -> (i32, i32) {
    %c0_i32 = arith.constant 0 : i32
    %c0_i32_0 = arith.constant 0 : i32
    return %arg0, %c0_i32 : i32, i32
  }
  func.func @transform_2(%arg0: i32) -> (i32, i32) {
    %c0_i32 = arith.constant 0 : i32
    %c0_i32_0 = arith.constant 0 : i32
    return %c0_i32, %arg0 : i32, i32
  }
}

</mosaic_0001>

<llo_original>
// kernel: tpu_custom_call.1
$region0: #{tpu_custom_call.1}
  #allocation0 [shape = 'u32[]', space=smem, size = 0x4, offset = 0x4, fixed_abs, tag = 'smem constant byte address 0x4 - core index']
  #allocation1 [shape = 'u32[144,128]{1,0:T(1,128)}', space=vmem, size = 0x12000, scoped, tag = 'internal scratch']
  %s0 = inlined_call_operand.vmem [shape: f32[16,32], index: 0, kind: input, shape index: {}]
  %s1 = inlined_call_operand.vmem [shape: s32[16,1], index: 1, kind: input, shape index: {}]
  %s2 = inlined_call_operand.hbm [shape: f32[1,256], index: 2, kind: output, shape index: {}]
  %s3 = sld [smem:[#allocation0]]
  $region41: #{tpu_custom_call.1} parent=0
    _
  %s5 = ssub.s32 1, %s3
  %s6 = scalar_select 0, %s5, %s3
  $region1: #{tpu_custom_call.1} parent=0
    #allocation2 [shape = 'u8[1024]{0}', space=vmem, size = 0x400, scoped, tag = 'output window, operand 0']
    #allocation3 [shape = 's32[2]{0}', space=sflag, size = 0x8, scoped, tag = 'scoped memory for tpu_custom_call.1']
    %7 = vsyncpa [#allocation3], 0
    %s8 = scalar_lea.sflag [#allocation3], 1
    %9 = vsyncpa %s8, 0
    loop: start=0, step=1, limit=4
    $region2: #{tpu_custom_call.1} parent=1 // loop_pre_header
      _
    $region3: #{tpu_custom_call.1} parent=1 // loop_header
      %s11 = sphi 0, %s15
      %p12 = scmp.ge.s32.totalorder %s11, 4
      %s21 = sphi 0, %s23
      %s24 = sphi 0, %s21
      %s25 = sphi 0, %s24
      %s41 = sphi 0, %s25
      %s47 = sphi 0, %s49
      %s50 = sphi 0, %s47
      %s51 = sphi 0, %s50
      %s67 = sphi 0, %s51
      %s73 = sphi 0, %s75
      %s76 = sphi 0, %s73
      %s77 = sphi 0, %s76
      %s93 = sphi 0, %s77
    $region4: #{tpu_custom_call.1} parent=1 // loop_header_branch
      %14 = sbr.rel (%p12) target = $region8
    $region5: #{tpu_custom_call.1} parent=1 // loop_body
      %s16 = ssub.s32 %s11, 1
      %s17 = ssub.s32 %s11, 2
      %s18 = sadd.s32 %s11, 1
      %s19 = ssub.s32 %s11, %s18
      %p20 = scmp.eq.s32.totalorder %s19, 0
      %s22 = sadd.s32 %s21, 1
      %s23 = scalar_select %p20, %s21, %s22
      %p26 = pneg %p20
      %p27 = scmp.eq.s32.totalorder %s11, 1
      %p28 = por %p26, %p27
      %p29 = scmp.ne.s32.totalorder %s21, %s24
      %p30 = scmp.eq.s32.totalorder %s11, 0
      %p31 = por %p29, %p30
      %p32 = scmp.ne.s32.totalorder %s21, %s24
      %p33 = scmp.eq.s32.totalorder %s16, 1
      %p34 = por %p32, %p33
      %p35 = scmp.ne.s32.totalorder %s24, %s25
      %p36 = scmp.eq.s32.totalorder %s16, 0
      %p37 = por %p35, %p36
      %p38 = scmp.ne.s32.totalorder %s24, %s25
      %p39 = scmp.eq.s32.totalorder %s17, 1
      %p40 = por %p38, %p39
      %p42 = scmp.ne.s32.totalorder %s25, %s41
      %p43 = scmp.eq.s32.totalorder %s17, 0
      %p44 = por %p42, %p43
      %s45 = ssub.s32 %s11, %s18
      %p46 = scmp.eq.s32.totalorder %s45, 0
      %s48 = sadd.s32 %s47, 1
      %s49 = scalar_select %p46, %s47, %s48
      %p52 = pneg %p46
      %p53 = scmp.eq.s32.totalorder %s11, 1
      %p54 = por %p52, %p53
      %p55 = scmp.ne.s32.totalorder %s47, %s50
      %p56 = scmp.eq.s32.totalorder %s11, 0
      %p57 = por %p55, %p56
      %p58 = scmp.ne.s32.totalorder %s47, %s50
      %p59 = scmp.eq.s32.totalorder %s16, 1
      %p60 = por %p58, %p59
      %p61 = scmp.ne.s32.totalorder %s50, %s51
      %p62 = scmp.eq.s32.totalorder %s16, 0
      %p63 = por %p61, %p62
      %p64 = scmp.ne.s32.totalorder %s50, %s51
      %p65 = scmp.eq.s32.totalorder %s17, 1
      %p66 = por %p64, %p65
      %p68 = scmp.ne.s32.totalorder %s51, %s67
      %p69 = scmp.eq.s32.totalorder %s17, 0
      %p70 = por %p68, %p69
      %s71 = ssub.s32 %s11, %s18
      %p72 = scmp.eq.s32.totalorder %s71, 0
      %s74 = sadd.s32 %s73, 1
      %s75 = scalar_select %p72, %s73, %s74
      %p78 = pneg %p72
      %p79 = scmp.eq.s32.totalorder %s11, 1
      %p80 = por %p78, %p79
      %p81 = scmp.ne.s32.totalorder %s73, %s76
      %p82 = scmp.eq.s32.totalorder %s11, 0
      %p83 = por %p81, %p82
      %p84 = scmp.ne.s32.totalorder %s73, %s76
      %p85 = scmp.eq.s32.totalorder %s16, 1
      %p86 = por %p84, %p85
      %p87 = scmp.ne.s32.totalorder %s76, %s77
      %p88 = scmp.eq.s32.totalorder %s16, 0
      %p89 = por %p87, %p88
      %p90 = scmp.ne.s32.totalorder %s76, %s77
      %p91 = scmp.eq.s32.totalorder %s17, 1
      %p92 = por %p90, %p91
      %p94 = scmp.ne.s32.totalorder %s77, %s93
      %p95 = scmp.eq.s32.totalorder %s17, 0
      %p96 = por %p94, %p95
      %p97 = scmp.le.s32.totalorder 1, %s11
      %p98 = scmp.lt.s32.totalorder %s11, 3
      %p99 = pnand %p97, %p98
      %p100 = pneg %p99
      // Predicated region
      $region9: #{tpu_custom_call.1} parent=5 // pred_check
        _
      $region10: #{tpu_custom_call.1} parent=5 // pred_check_branch
        %102 = sbr.rel (%p99) target = $region12
      $region11: #{tpu_custom_call.1} parent=5 // pred_region
        %s103 = ssub.s32 %s11, 1
      $region12: #{tpu_custom_call.1} parent=5 // pred_fallthru
        _
      %p104 = scmp.lt.s32.totalorder %s11, 2
      // Predicated region
      $region13: #{tpu_custom_call.1} parent=5 // pred_check
        %p105 = pneg %p104
      $region14: #{tpu_custom_call.1} parent=5 // pred_check_branch
        %107 = sbr.rel (%p105) target = $region16
      $region15: #{tpu_custom_call.1} parent=5 // pred_region
        // Predicated region
        $region17: #{tpu_custom_call.1} parent=15 // pred_check
          %p108 = pneg %p31
        $region18: #{tpu_custom_call.1} parent=15 // pred_check_branch
          %110 = sbr.rel (%p108) target = $region20
        $region19: #{tpu_custom_call.1} parent=15 // pred_region
          %p111 = scmp.lt.s32.totalorder %s11, 1
          %s112 = scalar_select %p111, %s11, 1
          %s113 = smul.addr %s112, 8
          %s114 = scalar_lea.vmem %s0, %s113
        $region20: #{tpu_custom_call.1} parent=15 // pred_fallthru
          _
        // Predicated region
        $region21: #{tpu_custom_call.1} parent=15 // pred_check
          %p115 = pneg %p57
        $region22: #{tpu_custom_call.1} parent=15 // pred_check_branch
          %117 = sbr.rel (%p115) target = $region24
        $region23: #{tpu_custom_call.1} parent=15 // pred_region
          %p118 = scmp.lt.s32.totalorder %s11, 1
          %s119 = scalar_select %p118, %s11, 1
          %s120 = smul.addr %s119, 8
          %s121 = scalar_lea.vmem %s1, %s120
        $region24: #{tpu_custom_call.1} parent=15 // pred_fallthru
          _
      $region16: #{tpu_custom_call.1} parent=5 // pred_fallthru
        _
      %p122 = scmp.le.s32.totalorder 1, %s11
      %p123 = scmp.lt.s32.totalorder %s11, 3
      %p124 = pnand %p122, %p123
      %p125 = pneg %p124
      // Predicated region
      $region25: #{tpu_custom_call.1} parent=5 // pred_check
        _
      $region26: #{tpu_custom_call.1} parent=5 // pred_check_branch
        %127 = sbr.rel (%p124) target = $region28
      $region27: #{tpu_custom_call.1} parent=5 // pred_region
        %s128 = ssub.s32 %s11, 1
        %p129 = scmp.lt.s32.totalorder %s16, 1
        %s130 = scalar_select %p129, %s16, 1
        %s131 = smul.addr %s130, 8
        %s132 = scalar_lea.vmem %s0, %s131
        %p133 = pneg %p37
        %p134 = pneg %p34
        %p135 = scmp.lt.s32.totalorder %s16, 1
        %s136 = scalar_select %p135, %s16, 1
        %s137 = smul.addr %s136, 8
        %s138 = scalar_lea.vmem %s1, %s137
        %p139 = pneg %p63
        %p140 = pneg %p60
        %p141 = pneg %p89
        %p142 = pneg %p86
        %s143 = sand.u32 %s76, 1
        %s144 = scalar_lea.sflag [#allocation3], %s143
        %s145 = sand.u32 %s76, 1
        %s146 = scalar_lea.vmem [#allocation2], %s145
        %p147 = scmp.lt.s32.totalorder %s16, 1
        %s148 = scalar_select %p147, %s16, 1
        %s149 = smul.addr %s148, 8
        %s150 = scalar_lea.vmem %s0, %s149
        %p151 = scmp.lt.s32.totalorder %s16, 1
        %s152 = scalar_select %p151, %s16, 1
        %s153 = smul.addr %s152, 8
        %s154 = scalar_lea.vmem %s1, %s153
        %v155 = vld [vmem:[%s150] sm:$0xff]
        %v156 = vld [vmem:[%s154] sm:$0xff]
        %v157 = vlaneseq
        %v158 = vand.u32 %v157, 127
        %159 = vset.pattern.permute.xlu0 0
        %160 = vperm.xlu0 %159, %v156
        %v161 = vpop.permute.xlu0 %160
        %vm162 = vcmp.eq.s32.totalorder %v158, %v161
        %v163 = vsel %vm162, %v155, 0.0
        %vm164 = vcmask 261120
        %v165 = vsel %vm164, %v163, 0.0
        %166 = vadd.xlane.f32.xlu0 %v165
        %v167 = vpop.xlane.xlu0 %166
        %v168 = vsel %vm164, %v155, -inf
        %169 = vmax.xlane.f32.xlu0 %v168
        %v170 = vpop.xlane.xlu0 %169
        %v171 = vsub.f32 %v155, %v170
        %v172 = vmul.f32 %v171, 1.442695
        %v173 = vpow.pop %v172
        %v174 = vsel %vm164, %v173, 0.0
        %175 = vadd.xlane.f32.xlu0 %v174
        %v176 = vpop.xlane.xlu0 %175
        %v177 = vlog2.pop %v176
        %v178 = vmul.f32 %v177, 0.6931472
        %v179 = vadd.f32 %v170, %v178
        %v180 = vsub.f32 %v167, %v179
        %v181 = vmul.f32 %v180, 1.442695
        %v182 = vpow.pop %v181
        %v183 = vsub.f32 1.0, %v182
        %v184 = vmul.f32 %v183, %v183
        %v185 = vmul.f32 %v184, %v180
        %s186 = smul.u32 %s16, 8
        %v187 = vlaneseq
        %v188 = vshrl.u32 %v187, 7
        %v189 = vstv %s186
        %v190 = vadd.s32 %v189, %v188
        %vm191 = vcmp.ne.s32.totalorder %v156, 4294967196
        %vm192 = vcmp.lt.s32.totalorder %v190, 16
        %vm193 = vmand %vm191, %vm192
        %v194 = vsub.f32 0.0, %v185
        %v195 = vsel %vm193, %v194, 0.0
        %vm196 = vcmask 7168
        %v197 = vsel %vm196, %v195, 0.0
        %v198 = vrot.slane %v197, 4
        %v199 = vadd.f32 %v197, %v198
        %v200 = vrot.slane %v199, 2
        %v201 = vadd.f32 %v199, %v200
        %v202 = vrot.slane %v201, 1
        %v203 = vadd.f32 %v201, %v202
        %205 = vset.pattern.permute.xlu0 0
        %206 = vperm.xlu0 %205, %v203
        %v207 = vpop.permute.xlu0 %206
        %209 = vst [vmem:[%s146] sm:$0x1] %v207
        %s210 = sand.u32 %s76, 1
        %s211 = scalar_lea.sflag [#allocation3], %s210
        %s212 = sand.u32 %s76, 1
        %s213 = scalar_lea.vmem [#allocation2], %s212
        // Predicated region
        $region29: #{tpu_custom_call.1} parent=27 // pred_check
          %p214 = pneg %p86
        $region30: #{tpu_custom_call.1} parent=27 // pred_check_branch
          %216 = sbr.rel (%p214) target = $region32
        $region31: #{tpu_custom_call.1} parent=27 // pred_region
          %s218 = ssub.s32 16, 16
          %219 = vsyncadd %s211, %s218
          %s220 = smul.addr %s16, 16
          %s221 = scalar_lea.hbm %s2, %s220
          %s223 = sshll.u32 %s213, 4
          %s224 = int_to_ptr.vmem [resolvable:$true] %s223
          %226 = dma.vmem_to_hbm [thread:$0]  %s224, 16, %s221, %s211
        $region32: #{tpu_custom_call.1} parent=27 // pred_fallthru
          _
      $region28: #{tpu_custom_call.1} parent=5 // pred_fallthru
        _
      %p227 = scmp.le.s32.totalorder 2, %s11
      // Predicated region
      $region33: #{tpu_custom_call.1} parent=5 // pred_check
        %p228 = pneg %p227
      $region34: #{tpu_custom_call.1} parent=5 // pred_check_branch
        %230 = sbr.rel (%p228) target = $region36
      $region35: #{tpu_custom_call.1} parent=5 // pred_region
        %s231 = ssub.s32 %s11, 2
        // Predicated region
        $region37: #{tpu_custom_call.1} parent=35 // pred_check
          %p232 = pneg %p92
        $region38: #{tpu_custom_call.1} parent=35 // pred_check_branch
          %234 = sbr.rel (%p232) target = $region40
        $region39: #{tpu_custom_call.1} parent=35 // pred_region
          %s235 = sand.u32 %s77, 1
          %s236 = scalar_lea.sflag [#allocation3], %s235
          %s237 = sand.u32 %s77, 1
          %s238 = scalar_lea.vmem [#allocation2], %s237
          %239 = dma.done %s236, 16
        $region40: #{tpu_custom_call.1} parent=35 // pred_fallthru
          _
      $region36: #{tpu_custom_call.1} parent=5 // pred_fallthru
        _
    $region6: #{tpu_custom_call.1} parent=1 // loop_footer
      %s15 = sadd.s32 1, %s11
    $region7: #{tpu_custom_call.1} parent=1 // loop_footer_branch
      %10 = sbr.rel target = $region3
    $region8: #{tpu_custom_call.1} parent=1 // loop_exit
      _
    %240 = vsyncpa [#allocation3], 1
    %s241 = scalar_lea.sflag [#allocation3], 1
    %242 = vsyncpa %s241, 1

</llo_original>
